<compile_context>
chip_gen: v5e
topology: v5e:2x2
jax: 0.10.0
libtpu: 0.0.40
codegen_flags: <defaults>
</compile_context>

<pallas_src>
import jax
import jax.numpy as jnp
from jax.experimental import pallas as pl
from jax.experimental.pallas import tpu as pltpu


def detection_loss_kernel(tgt_label_ref, packed_ref, out_ref):
    n = packed_ref.shape[0]
    inv_box = 1.0 / (4.0 * n)     # smooth-L1 'mean' divisor (N*4 elements)
    inv_score = 1.0 / n           # BCE 'mean' divisor (N elements)

    packed = packed_ref[...]                          # (N, 16): one vector load
    pred_boxes = packed[:, 0:4]
    target_boxes = packed[:, 4:8]
    pred_scores = packed[:, 8:9]
    target_scores = packed[:, 9:10]
    logits = jnp.trunc(packed[:, 10:11])              # emulate the .long() cast

    # ---- box_loss = F.smooth_l1_loss(pred_boxes, target_boxes) (beta=1, mean) ----
    d = pred_boxes - target_boxes
    ad = jnp.abs(d)
    sl1 = jnp.where(ad < 1.0, 0.5 * d * d, ad - 0.5) * inv_box          # (N, 4)

    # ---- score_loss = F.binary_cross_entropy(pred_scores, target_scores) ----
    # PyTorch BCE clamps the log terms at -100.
    log_p = jnp.maximum(jnp.log(pred_scores), -100.0)
    log_1mp = jnp.maximum(jnp.log(1.0 - pred_scores), -100.0)
    bce = -(target_scores * log_p
            + (1.0 - target_scores) * log_1mp) * inv_score              # (N, 1)

    # ---- class_loss = F.cross_entropy(pred_labels.long(), target_labels.long()) ----
    # TODO(synk): the original line is invalid PyTorch (cross_entropy needs a
    # float input); we emulate the closest valid semantics: truncate the labels
    # and treat the (N,) vector as unbatched logits vs a scalar integer target.
    m = jnp.max(logits)
    e = jnp.exp(logits - m)                                             # (N, 1)

    # Single fused sublane reduction for all three losses (one XLU pass).
    buf = jnp.concatenate([sl1, bce, e], axis=-1)                       # (N, 6)
    colsum = jnp.sum(buf, axis=0, keepdims=True)                        # (1, 6)
    box_score_loss = jnp.sum(colsum[:, 0:5])                            # box + score
    lse = jnp.log(jnp.sum(colsum[:, 5:6])) + m

    # logits[target]: SMEM scalar drives a dynamic sublane slice (no gather).
    tgt = tgt_label_ref[0]
    row = packed_ref[pl.ds(tgt, 1), :]                                  # (1, 16)
    selected = jnp.trunc(jnp.sum(row[:, 10:11]))
    class_loss = lse - selected

    out_ref[0] = box_score_loss + class_loss


def detection_loss(boxes_data, scores_data, target_boxes, target_scores,
                   target_label):
    """Pallas-backed DetectionLoss.forward.

    boxes_data:    (N, 6) f32   predictions.boxes.data
    scores_data:   (N, 6) f32   predictions.scores.data (col 4 = probability)
    target_boxes:  (N, 4) f32
    target_scores: (N,)   f32   values in (0, 1)
    target_label:  scalar int32 in [0, N)
    """
    n = boxes_data.shape[0]
    if n == 0:
        # Mirrors the `len(pred_boxes) == 0` early return (static in JAX).
        return jnp.float32(0.0)

    boxes_data = boxes_data.astype(jnp.float32)
    packed = jnp.concatenate(
        [
            boxes_data[:, 0:4],                                # pred boxes
            target_boxes.astype(jnp.float32),                  # target boxes
            scores_data[:, 4:5].astype(jnp.float32),           # pred score
            target_scores.reshape(n, 1).astype(jnp.float32),   # target score
            boxes_data[:, 5:6],                                # pred label
            jnp.zeros((n, 5), jnp.float32),                    # pad to 16 lanes
        ],
        axis=1,
    )                                                          # (N, 16)
    tlabel = jnp.asarray(target_label, jnp.int32).reshape(1)

    out = pl.pallas_call(
        detection_loss_kernel,
        out_shape=jax.ShapeDtypeStruct((1,), jnp.float32),
        in_specs=[
            pl.BlockSpec(memory_space=pltpu.MemorySpace.SMEM),   # target label
            pl.BlockSpec(memory_space=pltpu.MemorySpace.VMEM),   # packed slab
        ],
        out_specs=pl.BlockSpec(memory_space=pltpu.MemorySpace.SMEM),
    )(tlabel, packed)
    return out[0]


def detection_loss_ref(boxes_data, scores_data, target_boxes, target_scores,
                       target_label):
    """Pure-JAX reference used only for the correctness assert."""
    pred_boxes = boxes_data[:, :4]
    pred_scores = scores_data[:, 4]
    pred_labels = boxes_data[:, 5]

    d = pred_boxes - target_boxes
    ad = jnp.abs(d)
    box_loss = jnp.mean(jnp.where(ad < 1.0, 0.5 * d * d, ad - 0.5))

    log_p = jnp.maximum(jnp.log(pred_scores), -100.0)
    log_1mp = jnp.maximum(jnp.log(1.0 - pred_scores), -100.0)
    score_loss = jnp.mean(-(target_scores * log_p
                            + (1.0 - target_scores) * log_1mp))

    logits = jnp.trunc(pred_labels)
    class_loss = jax.nn.logsumexp(logits) - logits[target_label]
    return box_loss + score_loss + class_loss


if __name__ == "__main__":
    key = jax.random.PRNGKey(0)
    k1, k2, k3, k4, k5, k6 = jax.random.split(key, 6)

    N = 8  # number of detections

    # predictions.boxes.data: (N, 6) -> [x1, y1, x2, y2, obj, label]
    box_coords = jax.random.uniform(k1, (N, 4), jnp.float32) * 16.0
    obj_col = jax.random.uniform(k2, (N, 1), jnp.float32)
    label_col = jax.random.randint(k3, (N, 1), 0, N).astype(jnp.float32)
    boxes_data = jnp.concatenate([box_coords, obj_col, label_col], axis=1)

    # predictions.scores.data: (N, 6), column 4 is a probability in (0, 1)
    scores_data = jax.nn.sigmoid(jax.random.normal(k4, (N, 6), jnp.float32))

    # targets
    target_boxes = box_coords + 0.3 * jax.random.normal(k5, (N, 4), jnp.float32)
    target_scores = jax.nn.sigmoid(jax.random.normal(k6, (N,), jnp.float32))
    target_label = jnp.int32(3)

    loss = detection_loss(boxes_data, scores_data, target_boxes,
                          target_scores, target_label)
    loss = jax.block_until_ready(loss)

    ref = detection_loss_ref(boxes_data, scores_data, target_boxes,
                             target_scores, target_label)
    assert jnp.allclose(loss, ref, rtol=1e-5, atol=1e-5), (loss, ref)

    print("KERNEL_OK")
</pallas_src>

<mosaic_0001>
module attributes {stable_mosaic.version = 11 : i64} {
  func.func @detection_loss_kernel(%arg0: memref<1xi32, #tpu.memory_space<smem>>, %arg1: memref<8x16xf32, #tpu.memory_space<vmem>>, %arg2: memref<1xf32, #tpu.memory_space<smem>>) attributes {dimension_semantics = [], scalar_prefetch = 0 : i64, scratch_operands = 0 : i64, tpu.core_type = #tpu.core_type<tc>} {
    %c0 = arith.constant 0 : index
    %c0_0 = arith.constant 0 : index
    %0 = vector.load %arg1[%c0, %c0_0] : memref<8x16xf32, #tpu.memory_space<vmem>>, vector<8x16xf32>
    %1 = vector.extract_strided_slice %0 {offsets = [0, 0], sizes = [8, 4], strides = [1, 1]} : vector<8x16xf32> to vector<8x4xf32>
    %2 = vector.extract_strided_slice %0 {offsets = [0, 4], sizes = [8, 4], strides = [1, 1]} : vector<8x16xf32> to vector<8x4xf32>
    %3 = vector.extract_strided_slice %0 {offsets = [0, 8], sizes = [8, 1], strides = [1, 1]} : vector<8x16xf32> to vector<8x1xf32>
    %4 = vector.extract_strided_slice %0 {offsets = [0, 9], sizes = [8, 1], strides = [1, 1]} : vector<8x16xf32> to vector<8x1xf32>
    %5 = vector.extract_strided_slice %0 {offsets = [0, 10], sizes = [8, 1], strides = [1, 1]} : vector<8x16xf32> to vector<8x1xf32>
    %cst = arith.constant 0.000000e+00 : f32
    %6 = vector.broadcast %cst : f32 to vector<8x1xf32>
    %7 = arith.cmpf olt, %5, %6 : vector<8x1xf32>
    %8 = math.ceil %5 : vector<8x1xf32>
    %9 = math.floor %5 : vector<8x1xf32>
    %10 = arith.select %7, %8, %9 : vector<8x1xi1>, vector<8x1xf32>
    %11 = arith.subf %1, %2 : vector<8x4xf32>
    %12 = math.absf %11 : vector<8x4xf32>
    %cst_1 = arith.constant 1.000000e+00 : f32
    %13 = vector.broadcast %cst_1 : f32 to vector<8x4xf32>
    %14 = arith.cmpf olt, %12, %13 : vector<8x4xf32>
    %cst_2 = arith.constant 5.000000e-01 : f32
    %15 = vector.broadcast %cst_2 : f32 to vector<8x4xf32>
    %16 = arith.mulf %15, %11 : vector<8x4xf32>
    %17 = arith.mulf %16, %11 : vector<8x4xf32>
    %cst_3 = arith.constant 5.000000e-01 : f32
    %18 = vector.broadcast %cst_3 : f32 to vector<8x4xf32>
    %19 = arith.subf %12, %18 : vector<8x4xf32>
    %20 = arith.select %14, %17, %19 : vector<8x4xi1>, vector<8x4xf32>
    %cst_4 = arith.constant 3.125000e-02 : f32
    %21 = vector.broadcast %cst_4 : f32 to vector<8x4xf32>
    %22 = arith.mulf %20, %21 : vector<8x4xf32>
    %23 = math.log %3 : vector<8x1xf32>
    %cst_5 = arith.constant -1.000000e+02 : f32
    %24 = vector.broadcast %cst_5 : f32 to vector<8x1xf32>
    %25 = arith.maximumf %23, %24 : vector<8x1xf32>
    %cst_6 = arith.constant 1.000000e+00 : f32
    %26 = vector.broadcast %cst_6 : f32 to vector<8x1xf32>
    %27 = arith.subf %26, %3 : vector<8x1xf32>
    %28 = math.log %27 : vector<8x1xf32>
    %cst_7 = arith.constant -1.000000e+02 : f32
    %29 = vector.broadcast %cst_7 : f32 to vector<8x1xf32>
    %30 = arith.maximumf %28, %29 : vector<8x1xf32>
    %31 = arith.mulf %4, %25 : vector<8x1xf32>
    %cst_8 = arith.constant 1.000000e+00 : f32
    %32 = vector.broadcast %cst_8 : f32 to vector<8x1xf32>
    %33 = arith.subf %32, %4 : vector<8x1xf32>
    %34 = arith.mulf %33, %30 : vector<8x1xf32>
    %35 = arith.addf %31, %34 : vector<8x1xf32>
    %cst_9 = arith.constant 0.000000e+00 : f32
    %36 = vector.broadcast %cst_9 : f32 to vector<8x1xf32>
    %37 = arith.subf %36, %35 : vector<8x1xf32>
    %cst_10 = arith.constant 1.250000e-01 : f32
    %38 = vector.broadcast %cst_10 : f32 to vector<8x1xf32>
    %39 = arith.mulf %37, %38 : vector<8x1xf32>
    %40 = vector.shape_cast %10 : vector<8x1xf32> to vector<1x8x1xf32>
    %cst_11 = arith.constant dense<0xFF800000> : vector<1xf32>
    %41 = vector.multi_reduction <maximumf>, %40, %cst_11 [1, 2] : vector<1x8x1xf32> to vector<1xf32>
    %42 = vector.shape_cast %41 : vector<1xf32> to vector<1x1x1xf32>
    %43 = vector.extract %42[0, 0, 0] : f32 from vector<1x1x1xf32>
    %44 = vector.broadcast %43 : f32 to vector<8x1xf32>
    %45 = arith.subf %10, %44 : vector<8x1xf32>
    %46 = math.exp %45 : vector<8x1xf32>
    %47 = tpu.concatenate %22, %39, %46 in 1 : vector<8x4xf32>, vector<8x1xf32>, vector<8x1xf32> -> vector<8x6xf32>
    %cst_12 = arith.constant dense<0.000000e+00> : vector<6xf32>
    %48 = vector.multi_reduction <add>, %47, %cst_12 [0] : vector<8x6xf32> to vector<6xf32>
    %49 = vector.shape_cast %48 : vector<6xf32> to vector<1x6xf32>
    %50 = vector.extract_strided_slice %49 {offsets = [0, 0], sizes = [1, 5], strides = [1, 1]} : vector<1x6xf32> to vector<1x5xf32>
    %51 = vector.shape_cast %50 : vector<1x5xf32> to vector<1x1x5xf32>
    %cst_13 = arith.constant dense<0.000000e+00> : vector<1xf32>
    %52 = vector.multi_reduction <add>, %51, %cst_13 [1, 2] : vector<1x1x5xf32> to vector<1xf32>
    %53 = vector.shape_cast %52 : vector<1xf32> to vector<1x1x1xf32>
    %54 = vector.extract %53[0, 0, 0] : f32 from vector<1x1x1xf32>
    %55 = vector.extract_strided_slice %49 {offsets = [0, 5], sizes = [1, 1], strides = [1, 1]} : vector<1x6xf32> to vector<1x1xf32>
    %56 = vector.shape_cast %55 : vector<1x1xf32> to vector<1x1x1xf32>
    %cst_14 = arith.constant dense<0.000000e+00> : vector<1xf32>
    %57 = vector.multi_reduction <add>, %56, %cst_14 [1, 2] : vector<1x1x1xf32> to vector<1xf32>
    %58 = vector.shape_cast %57 : vector<1xf32> to vector<1x1x1xf32>
    %59 = vector.extract %58[0, 0, 0] : f32 from vector<1x1x1xf32>
    %60 = math.log %59 : f32
    %61 = arith.addf %60, %43 : f32
    %c0_15 = arith.constant 0 : index
    %62 = memref.load %arg0[%c0_15] : memref<1xi32, #tpu.memory_space<smem>>
    %63 = arith.index_cast %62 : i32 to index
    %c0_16 = arith.constant 0 : index
    %64 = vector.load %arg1[%63, %c0_16] : memref<8x16xf32, #tpu.memory_space<vmem>>, vector<1x16xf32>
    %65 = vector.extract_strided_slice %64 {offsets = [0, 10], sizes = [1, 1], strides = [1, 1]} : vector<1x16xf32> to vector<1x1xf32>
    %66 = vector.shape_cast %65 : vector<1x1xf32> to vector<1x1x1xf32>
    %cst_17 = arith.constant dense<0.000000e+00> : vector<1xf32>
    %67 = vector.multi_reduction <add>, %66, %cst_17 [1, 2] : vector<1x1x1xf32> to vector<1xf32>
    %68 = vector.shape_cast %67 : vector<1xf32> to vector<1x1x1xf32>
    %69 = vector.extract %68[0, 0, 0] : f32 from vector<1x1x1xf32>
    %cst_18 = arith.constant 0.000000e+00 : f32
    %70 = arith.cmpf olt, %69, %cst_18 : f32
    %71 = math.ceil %69 : f32
    %72 = math.floor %69 : f32
    %73 = arith.select %70, %71, %72 : f32
    %74 = arith.subf %61, %73 : f32
    %75 = arith.addf %54, %74 : f32
    %c0_19 = arith.constant 0 : index
    %76 = memref.load %arg2[%c0_19] : memref<1xf32, #tpu.memory_space<smem>>
    memref.store %75, %arg2[%c0_19] : memref<1xf32, #tpu.memory_space<smem>>
    return
  }
}

</mosaic_0001>

<llo_original>
// kernel: tpu_custom_call.1
$region0: #{tpu_custom_call.1}
  #allocation0 [shape = 'u32[]', space=smem, size = 0x4, offset = 0x4, fixed_abs, tag = 'smem constant byte address 0x4 - core index']
  #allocation1 [shape = 'u32[72,128]{1,0:T(1,128)}', space=vmem, size = 0x9000, scoped, tag = 'internal scratch']
  #allocation2 [shape = 's32[1]{0:T(128)S(6)}', space=smem, size = 0x200, scoped, tag = 'scoped memory for tpu_custom_call.1']
  %s0 = inlined_call_operand.<no memory space> [shape: s32[1], index: 0, kind: input, shape index: {}]
  %s1 = inlined_call_operand.hbm [shape: f32[8,16], index: 1, kind: input, shape index: {}]
  %s2 = inlined_call_operand.hbm [shape: f32[1], index: 2, kind: output, shape index: {}]
  %s3 = sld [smem:[#allocation0]]
  $region22: #{tpu_custom_call.1} parent=0
    _
  %s5 = ssub.s32 1, %s3
  %s6 = scalar_select 0, %s5, %s3
  %7 = sst [smem:[#allocation2]] %s0
  $region1: #{tpu_custom_call.1} parent=0
    #allocation3 [shape = 'u8[4096]{0}', space=vmem, size = 0x1000, scoped, tag = 'input window, operand 1, single buffered']
    #allocation4 [shape = 's32[1]{0}', space=sflag, size = 0x4, scoped, tag = 'scoped memory for tpu_custom_call.1']
    #allocation5 [shape = 's32[1]{0}', space=sflag, size = 0x4, scoped, tag = 'scoped memory for tpu_custom_call.1']
    #allocation6 [shape = 'u8[512]{0}', space=smem, size = 0x200, scoped, tag = 'output window, operand 0, single buffered']
    %8 = vsyncpa [#allocation4], 0
    %9 = vsyncpa [#allocation5], 0
    // Predicated region
    $region2: #{tpu_custom_call.1} parent=1 // pred_check
      _
    $region3: #{tpu_custom_call.1} parent=1 // pred_check_branch
      %11 = sbr.rel (0) target = $region5
    $region4: #{tpu_custom_call.1} parent=1 // pred_region
      _
    $region5: #{tpu_custom_call.1} parent=1 // pred_fallthru
      _
    // Predicated region
    $region6: #{tpu_custom_call.1} parent=1 // pred_check
      _
    $region7: #{tpu_custom_call.1} parent=1 // pred_check_branch
      %13 = sbr.rel (0) target = $region9
    $region8: #{tpu_custom_call.1} parent=1 // pred_region
      %15 = vsyncadd [#allocation4], 0
      %s17 = sshll.u32 %s1, 4
      %s18 = int_to_ptr.hbm [resolvable:$true] %s17
      %s19 = sshll.u32 [#allocation3], 4
      %s20 = int_to_ptr.vmem [resolvable:$true] %s19
      %22 = dma.hbm_to_vmem [thread:$0]  %s18, 128, %s20, [#allocation4]
    $region9: #{tpu_custom_call.1} parent=1 // pred_fallthru
      _
    // Predicated region
    $region10: #{tpu_custom_call.1} parent=1 // pred_check
      _
    $region11: #{tpu_custom_call.1} parent=1 // pred_check_branch
      %24 = sbr.rel (0) target = $region13
    $region12: #{tpu_custom_call.1} parent=1 // pred_region
      %26 = dma.done [#allocation4], 128
    $region13: #{tpu_custom_call.1} parent=1 // pred_fallthru
      _
    %v27 = vld [vmem:[#allocation3] sm:$0xff]
    %vm28 = vcmp.lt.f32.partialorder %v27, 0.0
    %v29 = vceil.f32 %v27
    %v30 = vfloor.f32 %v27
    %v31 = vsel %vm28, %v29, %v30
    %33 = vrot.lane.b32.xlu0 %v27, 124
    %v34 = vpop.permute.xlu0 %33
    %v36 = vsub.f32 %v27, %v34
    %v37 = vand.u32 2147483647, %v36
    %vm38 = vcmp.lt.f32.partialorder %v37, 1.0
    %v39 = vmul.f32 %v36, 0.5
    %v40 = vmul.f32 %v39, %v36
    %v41 = vsub.f32 %v37, 0.5
    %v42 = vsel %vm38, %v40, %v41
    %v43 = vmul.f32 %v42, 0.03125
    %v44 = vlog2.pop %v27
    %v45 = vmul.f32 %v44, 0.6931472
    %v46 = vmax.f32 %v45, -100.0
    %v47 = vsub.f32 1.0, %v27
    %v48 = vlog2.pop %v47
    %v49 = vmul.f32 %v48, 0.6931472
    %v50 = vmax.f32 %v49, -100.0
    %52 = vrot.lane.b32.xlu0 %v46, 1
    %v53 = vpop.permute.xlu0 %52
    %v55 = vmul.f32 %v27, %v53
    %57 = vrot.lane.b32.xlu0 %v50, 1
    %v58 = vpop.permute.xlu0 %57
    %v60 = vmul.f32 %v47, %v58
    %v61 = vadd.f32 %v55, %v60
    %v62 = vsub.f32 0.0, %v61
    %v63 = vmul.f32 %v62, 0.125
    %vm64 = vcmask 89168
    %v65 = vsel %vm64, %v31, -inf
    %66 = vmax.xlane.f32.xlu0 %v65
    %v67 = vpop.xlane.xlu0 %66
    %v68 = vrot.slane %v67, 4
    %v69 = vmax.f32 %v67, %v68
    %v70 = vrot.slane %v69, 2
    %v71 = vmax.f32 %v69, %v70
    %v72 = vrot.slane %v71, 1
    %v73 = vmax.f32 %v71, %v72
    %s74 = vtos %v73
    %v75 = vstv %s74
    %v76 = vsub.f32 %v31, %v75
    %v77 = vmul.f32 %v76, 1.442695
    %v78 = vpow.pop %v77
    %80 = vrot.lane.b32.xlu0 %v63, 123
    %v81 = vpop.permute.xlu0 %80
    %84 = vrot.lane.b32.xlu0 %v78, 123
    %v85 = vpop.permute.xlu0 %84
    %vm87 = vcmask 31744
    %v88 = vsel %vm87, %v43, %v81
    %vm89 = vcmask 39936
    %v90 = vsel %vm89, %v88, %v85
    %vm91 = vcmask 48128
    %v92 = vsel %vm91, %v90, 0.0
    %v93 = vrot.slane %v92, 4
    %v94 = vadd.f32 %v92, %v93
    %v95 = vrot.slane %v94, 2
    %v96 = vadd.f32 %v94, %v95
    %v97 = vrot.slane %v96, 1
    %v98 = vadd.f32 %v96, %v97
    %vm99 = vcmask 32768
    %v100 = vsel %vm99, %v98, 0.0
    %101 = vadd.xlane.f32.xlu0 %v100
    %v102 = vpop.xlane.xlu0 %101
    %v103 = vrot.slane %v102, 4
    %v104 = vadd.f32 %v102, %v103
    %v105 = vrot.slane %v104, 2
    %v106 = vadd.f32 %v104, %v105
    %v107 = vrot.slane %v106, 1
    %v108 = vadd.f32 %v106, %v107
    %s109 = vtos %v108
    %v110 = vadd.f32 %v98, 0.0
    %112 = vrot.lane.b32.xlu0 %v110, 123
    %v113 = vpop.permute.xlu0 %112
    %s115 = vtos %v113
    %v116 = vstv %s115
    %v117 = vlog2.pop %v116
    %v118 = vmul.f32 %v117, 0.6931472
    %s119 = vtos %v118
    %s120 = sadd.f32 %s119, %s74
    %s121 = sld [smem:[#allocation2]]
    %s122 = scalar_lea.vmem [#allocation3], %s121
    %v123 = vld [vmem:[%s122] sm:$0x1]
    %v124 = vadd.f32 %v123, 0.0
    %126 = vrot.lane.b32.xlu0 %v124, 118
    %v127 = vpop.permute.xlu0 %126
    %s129 = vtos %v127
    %p130 = scmp.lt.f32.partialorder %s129, 0.0
    %s131 = sceil.f32 %s129
    %s132 = sfloor.f32 %s129
    %s133 = scalar_select %p130, %s131, %s132
    %s134 = ssub.f32 %s120, %s133
    %s135 = sadd.f32 %s109, %s134
    %s136 = scalar_lea.smem [#allocation6], 0
    %137 = sst [smem:[%s136]] %s135
    // Predicated region
    $region14: #{tpu_custom_call.1} parent=1 // pred_check
      _
    $region15: #{tpu_custom_call.1} parent=1 // pred_check_branch
      %139 = sbr.rel (0) target = $region17
    $region16: #{tpu_custom_call.1} parent=1 // pred_region
      %141 = vsyncadd [#allocation5], 0
      %s143 = sshll.u32 %s2, 4
      %s144 = int_to_ptr.hbm [resolvable:$true] %s143
      %146 = dma.smem_to_hbm [#allocation6], 16, %s144, [#allocation5]
    $region17: #{tpu_custom_call.1} parent=1 // pred_fallthru
      _
    // Predicated region
    $region18: #{tpu_custom_call.1} parent=1 // pred_check
      _
    $region19: #{tpu_custom_call.1} parent=1 // pred_check_branch
      %148 = sbr.rel (0) target = $region21
    $region20: #{tpu_custom_call.1} parent=1 // pred_region
      %150 = dma.done [#allocation5], 16
    $region21: #{tpu_custom_call.1} parent=1 // pred_fallthru
      _
    %151 = sfence
    %152 = vsyncpa [#allocation4], 1
    %153 = vsyncpa [#allocation5], 1

</llo_original>
